<compile_context>
chip_gen: v5e
topology: v5e:2x2
jax: 0.10.0
libtpu: 0.0.40
codegen_flags: <defaults>
</compile_context>

<pallas_src>
import functools

import jax
import jax.numpy as jnp
from jax import lax
from jax.experimental import pallas as pl
from jax.experimental.pallas import tpu as pltpu


def _resident_gather_kernel(idx_ref, table_ref, out_ref, *, tb, group):
    """Gather tb rows of the VMEM-resident fused table into one output tile.

    idx_ref   : SMEM (b_pad,) int32      (scalar-prefetched indices)
    table_ref : VMEM (num_pad, d_pad)    (whole fused table, single copy)
    out_ref   : VMEM (tb, d_pad)         (lane/sublane-dense output tile)
    """
    base = pl.program_id(0) * tb

    def body(g, carry):
        row0 = base + g * group
        rows = [table_ref[pl.ds(idx_ref[row0 + i], 1), :] for i in range(group)]
        off = pl.multiple_of(g * group, group)
        # One unmasked (group, d_pad) store per group -> live vregs bounded.
        out_ref[pl.ds(off, group), :] = jnp.concatenate(rows, axis=0)
        return carry

    trips = tb // group
    lax.fori_loop(0, trips, body, 0, unroll=2 if trips % 2 == 0 else 1)


def _hbm_group_gather_kernel(idx_ref, *refs):
    """Fallback: `group` data-dependent row DMAs already landed in VMEM;
    pack them into one lane/sublane-dense (group, d_pad) output tile."""
    out_ref = refs[-1]
    row_refs = refs[:-1]
    d = out_ref.shape[-1]
    out_ref[...] = jnp.concatenate([r[...].reshape(1, d) for r in row_refs],
                                   axis=0)


def make_emb_combine(poi_table, loc_table, *,
                     table_vmem_budget_bytes=24 * 1024 * 1024):
    """Fuse/pad the two embedding tables ONCE; return a jitted fn of x.

    poi_table: [num_poi, D_poi], loc_table: [num_loc, K, D_loc].
    table_vmem_budget_bytes: max (single-buffered) fused-table size that may
      live resident in VMEM.  Default 24 MiB is safe on v5e/v6e/v7x; on
      v6e/v5e (128 MiB physical VMEM) it can be raised to ~48 MiB.
    """
    num_poi, d_poi = poi_table.shape
    num_loc, K, d_loc = loc_table.shape
    d_total = d_poi + K * d_loc
    out_dtype = jnp.result_type(poi_table.dtype, loc_table.dtype)
    itemsize = jnp.dtype(out_dtype).itemsize

    # dtype-aware sublane group: 8 rows f32, 16 bf16, 32 int8/fp8.
    group = max(8, 32 // itemsize)

    # ---- Fuse the two tables once (same index feeds both lookups). ----
    num = max(num_poi, num_loc)
    poi2 = poi_table.astype(out_dtype)
    loc2 = loc_table.reshape(num_loc, K * d_loc).astype(out_dtype)
    if num_poi < num:
        poi2 = jnp.pad(poi2, ((0, num - num_poi), (0, 0)))
    if num_loc < num:
        loc2 = jnp.pad(loc2, ((0, num - num_loc), (0, 0)))
    fused = jnp.concatenate([poi2, loc2], axis=1)                 # [num, d_total]

    # Lane-pad to 128 / row-pad to the sublane group so every kernel store is
    # unmasked and (8,128)-aligned.  Done once here, not per call.
    d_pad = pl.cdiv(d_total, 128) * 128
    num_pad = pl.cdiv(num, group) * group
    fused = jnp.pad(fused, ((0, num_pad - num), (0, d_pad - d_total)))

    table_bytes = num_pad * d_pad * itemsize
    resident = table_bytes <= table_vmem_budget_bytes
    fused_arg = fused if resident else fused.reshape(num_pad, 1, d_pad)

    def apply(x):
        B = x.shape[0]
        idx = jnp.clip(x.astype(jnp.int32), 0, num - 1)

        if resident:
            # ---- Fast path: fused table resident in VMEM (single copy). ----
            tb = min(8 * group, pl.cdiv(B, group) * group)   # 64 rows for f32
            b_pad = pl.cdiv(B, tb) * tb
            idx_p = jnp.pad(idx, (0, b_pad - B))
            steps = b_pad // tb
            vmem_limit = max(32 * 1024 * 1024,
                             int(table_bytes + 2 * tb * d_pad * itemsize
                                 + (4 << 20)))
            out = pl.pallas_call(
                functools.partial(_resident_gather_kernel, tb=tb, group=group),
                out_shape=jax.ShapeDtypeStruct((b_pad, d_pad), out_dtype),
                grid_spec=pltpu.PrefetchScalarGridSpec(
                    num_scalar_prefetch=1,           # indices land in SMEM
                    grid=(steps,),
                    # Whole fused table placed in VMEM once: no per-operand
                    # double buffering of a multi-MiB table.
                    in_specs=[pl.BlockSpec(memory_space=pltpu.MemorySpace.VMEM)],
                    out_specs=pl.BlockSpec((tb, d_pad),
                                           lambda b, idx_sref: (b, 0)),
                ),
                compiler_params=pltpu.CompilerParams(
                    # Split the batch across v7x's two TCs only when there are
                    # enough steps to amortize the duplicated table copy.
                    dimension_semantics=(
                        ("parallel",) if steps >= 4 else ("arbitrary",)),
                    vmem_limit_bytes=vmem_limit),
            )(idx_p, fused_arg)
        else:
            # ---- Large vocab: table stays in HBM; gather `group` rows per
            # grid step via data-dependent row DMAs, 4-deep buffered. ----
            b_pad = pl.cdiv(B, group) * group
            idx_p = jnp.pad(idx, (0, b_pad - B))
            in_specs = [
                pl.BlockSpec(
                    (1, 1, d_pad),
                    (lambda b, idx_sref, i=i: (idx_sref[b * group + i], 0, 0)),
                    pipeline_mode=pl.Buffered(4))
                for i in range(group)
            ]
            out = pl.pallas_call(
                _hbm_group_gather_kernel,
                out_shape=jax.ShapeDtypeStruct((b_pad, d_pad), out_dtype),
                grid_spec=pltpu.PrefetchScalarGridSpec(
                    num_scalar_prefetch=1,
                    grid=(b_pad // group,),
                    in_specs=in_specs,
                    out_specs=pl.BlockSpec((group, d_pad),
                                           lambda b, idx_sref: (b, 0)),
                ),
                compiler_params=pltpu.CompilerParams(
                    dimension_semantics=("parallel",)),
            )(idx_p, *([fused_arg] * group))

        # Un-pad rows and lanes (cheap fused XLA slice).
        return out[:B, :d_total]

    return jax.jit(apply)


def emb_combine(x, poi_table, loc_table, **kwargs):
    """One-shot convenience (rebuilds the fused table each call; prefer
    make_emb_combine for repeated use)."""
    return make_emb_combine(poi_table, loc_table, **kwargs)(x)


if __name__ == "__main__":
    key = jax.random.PRNGKey(0)
    k_poi, k_loc, k_idx = jax.random.split(key, 3)

    # Small, forward-consistent shapes (exercise row + lane padding too).
    B = 10           # batch of indices
    num_poi = 32     # poi_emb vocabulary
    d_poi = 32       # poi_emb embedding dim
    num_loc = 32     # loc_emb vocabulary
    K = 4            # loc_emb sub-embeddings per index
    d_loc = 20       # -> output width 32 + 80 = 112 (lane-padded to 128)

    poi_table = jax.random.normal(k_poi, (num_poi, d_poi), dtype=jnp.float32)
    loc_table = jax.random.normal(k_loc, (num_loc, K, d_loc), dtype=jnp.float32)
    x = jax.random.randint(k_idx, (B,), 0, min(num_poi, num_loc), dtype=jnp.int32)

    # Pure-JAX reference of the PyTorch forward.
    ref = jnp.concatenate([poi_table[x], loc_table[x].reshape(B, -1)], axis=1)

    # Path 1: default VMEM-resident fused-table gather (table built once).
    fn = make_emb_combine(poi_table, loc_table)
    out = jax.block_until_ready(fn(x))
    assert out.shape == (B, d_poi + K * d_loc), out.shape
    assert out.dtype == jnp.float32
    assert jnp.allclose(out, ref), "resident-path mismatch vs reference"

    # Path 2: large-vocab fallback (forced by zero table budget) — same result.
    fn_hbm = make_emb_combine(poi_table, loc_table, table_vmem_budget_bytes=0)
    out2 = jax.block_until_ready(fn_hbm(x))
    assert jnp.allclose(out2, ref), "HBM-gather-path mismatch vs reference"

    print("KERNEL_OK")
</pallas_src>

<mosaic_0001>
module attributes {stable_mosaic.version = 11 : i64} {
  func.func @_resident_gather_kernel(%arg0: i32, %arg1: memref<16xi32, #tpu.memory_space<smem>>, %arg2: memref<32x128xf32, #tpu.memory_space<vmem>>, %arg3: memref<16x128xf32, #tpu.memory_space<vmem>>) attributes {dimension_semantics = [#tpu.dimension_semantics<arbitrary>], iteration_bounds = array<i64: 1>, scalar_prefetch = 1 : i64, scratch_operands = 0 : i64, tpu.core_type = #tpu.core_type<tc>, window_params = [{pipeline_mode = #tpu.pipeline_mode<synchronous>, transform_indices = @transform_0, window_bounds = array<i64: 32, 128>}, {transform_indices = @transform_1, window_bounds = array<i64: 16, 128>}]} {
    %c16_i32 = arith.constant 16 : i32
    %0 = arith.muli %arg0, %c16_i32 : i32
    %c0_i32 = arith.constant 0 : i32
    %c8_i32 = arith.constant 8 : i32
    %1 = arith.muli %c0_i32, %c8_i32 : i32
    %2 = arith.addi %0, %1 : i32
    %c0_i32_0 = arith.constant 0 : i32
    %3 = arith.addi %2, %c0_i32_0 : i32
    %4 = arith.index_cast %3 : i32 to index
    %5 = memref.load %arg1[%4] : memref<16xi32, #tpu.memory_space<smem>>
    %6 = arith.index_cast %5 : i32 to index
    %c0 = arith.constant 0 : index
    %7 = vector.load %arg2[%6, %c0] : memref<32x128xf32, #tpu.memory_space<vmem>>, vector<1x128xf32>
    %c1_i32 = arith.constant 1 : i32
    %8 = arith.addi %2, %c1_i32 : i32
    %9 = arith.index_cast %8 : i32 to index
    %10 = memref.load %arg1[%9] : memref<16xi32, #tpu.memory_space<smem>>
    %11 = arith.index_cast %10 : i32 to index
    %c0_1 = arith.constant 0 : index
    %12 = vector.load %arg2[%11, %c0_1] : memref<32x128xf32, #tpu.memory_space<vmem>>, vector<1x128xf32>
    %c2_i32 = arith.constant 2 : i32
    %13 = arith.addi %2, %c2_i32 : i32
    %14 = arith.index_cast %13 : i32 to index
    %15 = memref.load %arg1[%14] : memref<16xi32, #tpu.memory_space<smem>>
    %16 = arith.index_cast %15 : i32 to index
    %c0_2 = arith.constant 0 : index
    %17 = vector.load %arg2[%16, %c0_2] : memref<32x128xf32, #tpu.memory_space<vmem>>, vector<1x128xf32>
    %c3_i32 = arith.constant 3 : i32
    %18 = arith.addi %2, %c3_i32 : i32
    %19 = arith.index_cast %18 : i32 to index
    %20 = memref.load %arg1[%19] : memref<16xi32, #tpu.memory_space<smem>>
    %21 = arith.index_cast %20 : i32 to index
    %c0_3 = arith.constant 0 : index
    %22 = vector.load %arg2[%21, %c0_3] : memref<32x128xf32, #tpu.memory_space<vmem>>, vector<1x128xf32>
    %c4_i32 = arith.constant 4 : i32
    %23 = arith.addi %2, %c4_i32 : i32
    %24 = arith.index_cast %23 : i32 to index
    %25 = memref.load %arg1[%24] : memref<16xi32, #tpu.memory_space<smem>>
    %26 = arith.index_cast %25 : i32 to index
    %c0_4 = arith.constant 0 : index
    %27 = vector.load %arg2[%26, %c0_4] : memref<32x128xf32, #tpu.memory_space<vmem>>, vector<1x128xf32>
    %c5_i32 = arith.constant 5 : i32
    %28 = arith.addi %2, %c5_i32 : i32
    %29 = arith.index_cast %28 : i32 to index
    %30 = memref.load %arg1[%29] : memref<16xi32, #tpu.memory_space<smem>>
    %31 = arith.index_cast %30 : i32 to index
    %c0_5 = arith.constant 0 : index
    %32 = vector.load %arg2[%31, %c0_5] : memref<32x128xf32, #tpu.memory_space<vmem>>, vector<1x128xf32>
    %c6_i32 = arith.constant 6 : i32
    %33 = arith.addi %2, %c6_i32 : i32
    %34 = arith.index_cast %33 : i32 to index
    %35 = memref.load %arg1[%34] : memref<16xi32, #tpu.memory_space<smem>>
    %36 = arith.index_cast %35 : i32 to index
    %c0_6 = arith.constant 0 : index
    %37 = vector.load %arg2[%36, %c0_6] : memref<32x128xf32, #tpu.memory_space<vmem>>, vector<1x128xf32>
    %c7_i32 = arith.constant 7 : i32
    %38 = arith.addi %2, %c7_i32 : i32
    %39 = arith.index_cast %38 : i32 to index
    %40 = memref.load %arg1[%39] : memref<16xi32, #tpu.memory_space<smem>>
    %41 = arith.index_cast %40 : i32 to index
    %c0_7 = arith.constant 0 : index
    %42 = vector.load %arg2[%41, %c0_7] : memref<32x128xf32, #tpu.memory_space<vmem>>, vector<1x128xf32>
    %c8_i32_8 = arith.constant 8 : i32
    %43 = arith.muli %c0_i32, %c8_i32_8 : i32
    %44 = tpu.assume_multiple %43, 8 : i32
    %45 = tpu.concatenate %7, %12, %17, %22, %27, %32, %37, %42 in 0 : vector<1x128xf32>, vector<1x128xf32>, vector<1x128xf32>, vector<1x128xf32>, vector<1x128xf32>, vector<1x128xf32>, vector<1x128xf32>, vector<1x128xf32> -> vector<8x128xf32>
    %46 = arith.index_cast %44 : i32 to index
    %c0_9 = arith.constant 0 : index
    %47 = vector.load %arg3[%46, %c0_9] : memref<16x128xf32, #tpu.memory_space<vmem>>, vector<8x128xf32>
    tpu.vector_store %arg3[%46, %c0_9], %45 {strides = array<i32>} : memref<16x128xf32, #tpu.memory_space<vmem>>, vector<8x128xf32>,
    %c1_i32_10 = arith.constant 1 : i32
    %c8_i32_11 = arith.constant 8 : i32
    %48 = arith.muli %c1_i32_10, %c8_i32_11 : i32
    %49 = arith.addi %0, %48 : i32
    %c0_i32_12 = arith.constant 0 : i32
    %50 = arith.addi %49, %c0_i32_12 : i32
    %51 = arith.index_cast %50 : i32 to index
    %52 = memref.load %arg1[%51] : memref<16xi32, #tpu.memory_space<smem>>
    %53 = arith.index_cast %52 : i32 to index
    %c0_13 = arith.constant 0 : index
    %54 = vector.load %arg2[%53, %c0_13] : memref<32x128xf32, #tpu.memory_space<vmem>>, vector<1x128xf32>
    %c1_i32_14 = arith.constant 1 : i32
    %55 = arith.addi %49, %c1_i32_14 : i32
    %56 = arith.index_cast %55 : i32 to index
    %57 = memref.load %arg1[%56] : memref<16xi32, #tpu.memory_space<smem>>
    %58 = arith.index_cast %57 : i32 to index
    %c0_15 = arith.constant 0 : index
    %59 = vector.load %arg2[%58, %c0_15] : memref<32x128xf32, #tpu.memory_space<vmem>>, vector<1x128xf32>
    %c2_i32_16 = arith.constant 2 : i32
    %60 = arith.addi %49, %c2_i32_16 : i32
    %61 = arith.index_cast %60 : i32 to index
    %62 = memref.load %arg1[%61] : memref<16xi32, #tpu.memory_space<smem>>
    %63 = arith.index_cast %62 : i32 to index
    %c0_17 = arith.constant 0 : index
    %64 = vector.load %arg2[%63, %c0_17] : memref<32x128xf32, #tpu.memory_space<vmem>>, vector<1x128xf32>
    %c3_i32_18 = arith.constant 3 : i32
    %65 = arith.addi %49, %c3_i32_18 : i32
    %66 = arith.index_cast %65 : i32 to index
    %67 = memref.load %arg1[%66] : memref<16xi32, #tpu.memory_space<smem>>
    %68 = arith.index_cast %67 : i32 to index
    %c0_19 = arith.constant 0 : index
    %69 = vector.load %arg2[%68, %c0_19] : memref<32x128xf32, #tpu.memory_space<vmem>>, vector<1x128xf32>
    %c4_i32_20 = arith.constant 4 : i32
    %70 = arith.addi %49, %c4_i32_20 : i32
    %71 = arith.index_cast %70 : i32 to index
    %72 = memref.load %arg1[%71] : memref<16xi32, #tpu.memory_space<smem>>
    %73 = arith.index_cast %72 : i32 to index
    %c0_21 = arith.constant 0 : index
    %74 = vector.load %arg2[%73, %c0_21] : memref<32x128xf32, #tpu.memory_space<vmem>>, vector<1x128xf32>
    %c5_i32_22 = arith.constant 5 : i32
    %75 = arith.addi %49, %c5_i32_22 : i32
    %76 = arith.index_cast %75 : i32 to index
    %77 = memref.load %arg1[%76] : memref<16xi32, #tpu.memory_space<smem>>
    %78 = arith.index_cast %77 : i32 to index
    %c0_23 = arith.constant 0 : index
    %79 = vector.load %arg2[%78, %c0_23] : memref<32x128xf32, #tpu.memory_space<vmem>>, vector<1x128xf32>
    %c6_i32_24 = arith.constant 6 : i32
    %80 = arith.addi %49, %c6_i32_24 : i32
    %81 = arith.index_cast %80 : i32 to index
    %82 = memref.load %arg1[%81] : memref<16xi32, #tpu.memory_space<smem>>
    %83 = arith.index_cast %82 : i32 to index
    %c0_25 = arith.constant 0 : index
    %84 = vector.load %arg2[%83, %c0_25] : memref<32x128xf32, #tpu.memory_space<vmem>>, vector<1x128xf32>
    %c7_i32_26 = arith.constant 7 : i32
    %85 = arith.addi %49, %c7_i32_26 : i32
    %86 = arith.index_cast %85 : i32 to index
    %87 = memref.load %arg1[%86] : memref<16xi32, #tpu.memory_space<smem>>
    %88 = arith.index_cast %87 : i32 to index
    %c0_27 = arith.constant 0 : index
    %89 = vector.load %arg2[%88, %c0_27] : memref<32x128xf32, #tpu.memory_space<vmem>>, vector<1x128xf32>
    %c8_i32_28 = arith.constant 8 : i32
    %90 = arith.muli %c1_i32_10, %c8_i32_28 : i32
    %91 = tpu.assume_multiple %90, 8 : i32
    %92 = tpu.concatenate %54, %59, %64, %69, %74, %79, %84, %89 in 0 : vector<1x128xf32>, vector<1x128xf32>, vector<1x128xf32>, vector<1x128xf32>, vector<1x128xf32>, vector<1x128xf32>, vector<1x128xf32>, vector<1x128xf32> -> vector<8x128xf32>
    %93 = arith.index_cast %91 : i32 to index
    %c0_29 = arith.constant 0 : index
    %94 = vector.load %arg3[%93, %c0_29] : memref<16x128xf32, #tpu.memory_space<vmem>>, vector<8x128xf32>
    tpu.vector_store %arg3[%93, %c0_29], %92 {strides = array<i32>} : memref<16x128xf32, #tpu.memory_space<vmem>>, vector<8x128xf32>,
    %c2_i32_30 = arith.constant 2 : i32
    return
  }
  func.func @transform_0(%arg0: i32, %arg1: memref<16xi32, #tpu.memory_space<smem>>) -> (i32, i32) {
    %c0_i32 = arith.constant 0 : i32
    %c0_i32_0 = arith.constant 0 : i32
    %c0_i32_1 = arith.constant 0 : i32
    return %c0_i32, %c0_i32_0 : i32, i32
  }
  func.func @transform_1(%arg0: i32, %arg1: memref<16xi32, #tpu.memory_space<smem>>) -> (i32, i32) {
    %c0_i32 = arith.constant 0 : i32
    %c0_i32_0 = arith.constant 0 : i32
    return %arg0, %c0_i32 : i32, i32
  }
}

</mosaic_0001>

<llo_original>
// kernel: apply.1
$region0: #{apply.1}
  #allocation0 [shape = 'u32[]', space=smem, size = 0x4, offset = 0x4, fixed_abs, tag = 'smem constant byte address 0x4 - core index']
  #allocation1 [shape = 'u32[72,128]{1,0:T(1,128)}', space=vmem, size = 0x9000, scoped, tag = 'internal scratch']
  #allocation2 [shape = 's32[1]{0}', space=sflag, size = 0x4, scoped, tag = 'scoped memory for apply.1']
  #allocation3 [shape = 'u8[512]{0}', space=smem, size = 0x200, scoped, tag = 'prefetched SMEM operand 0']
  %s0 = inlined_call_operand.vmem [shape: s32[16], index: 0, kind: input, shape index: {}]
  %s1 = inlined_call_operand.hbm [shape: f32[32,128], index: 1, kind: input, shape index: {}]
  %s2 = inlined_call_operand.hbm [shape: f32[16,128], index: 2, kind: output, shape index: {}]
  %s3 = sld [smem:[#allocation0]]
  $region18: #{apply.1} parent=0
    _
  %s5 = ssub.s32 1, %s3
  %s6 = scalar_select 0, %s5, %s3
  %s8 = sshll.u32 %s0, 4
  %s9 = int_to_ptr.vmem [resolvable:$true] %s8
  %11 = dma.vmem_to_smem %s9, 16, [#allocation3], [#allocation2]
  %13 = dma.done [#allocation2], 16
  %14 = sfence
  $region1: #{apply.1} parent=0
    #allocation4 [shape = 'u8[16384]{0}', space=vmem, size = 0x4000, scoped, tag = 'input window, operand 1, single buffered']
    #allocation5 [shape = 's32[1]{0}', space=sflag, size = 0x4, scoped, tag = 'scoped memory for apply.1']
    #allocation6 [shape = 's32[1]{0}', space=sflag, size = 0x4, scoped, tag = 'scoped memory for apply.1']
    #allocation7 [shape = 'u8[8192]{0}', space=vmem, size = 0x2000, scoped, tag = 'output window, operand 0, single buffered']
    %15 = vsyncpa [#allocation5], 0
    %16 = vsyncpa [#allocation6], 0
    // Predicated region
    $region2: #{apply.1} parent=1 // pred_check
      _
    $region3: #{apply.1} parent=1 // pred_check_branch
      %18 = sbr.rel (0) target = $region5
    $region4: #{apply.1} parent=1 // pred_region
      %20 = vsyncadd [#allocation5], 0
      %s21 = sshll.u32 %s1, 4
      %s22 = int_to_ptr.hbm [resolvable:$true] %s21
      %s23 = sshll.u32 [#allocation4], 4
      %s24 = int_to_ptr.vmem [resolvable:$true] %s23
      %29 = dma.hbm_to_vmem [thread:$0]  %s22, 512, %s24, [#allocation5], 128, 128, 8
    $region5: #{apply.1} parent=1 // pred_fallthru
      _
    // Predicated region
    $region6: #{apply.1} parent=1 // pred_check
      _
    $region7: #{apply.1} parent=1 // pred_check_branch
      %31 = sbr.rel (0) target = $region9
    $region8: #{apply.1} parent=1 // pred_region
      %33 = dma.done [#allocation5], 512
    $region9: #{apply.1} parent=1 // pred_fallthru
      _
    %s34 = smul.u32 0, 16
    %s35 = sld [smem:[#allocation3 + %s34]]
    %s36 = scalar_lea.vmem [#allocation4], %s35
    %v37 = vld [vmem:[%s36] sm:$0x1]
    %s38 = sadd.s32 %s34, 1
    %s39 = sld [smem:[#allocation3 + %s38]]
    %s40 = scalar_lea.vmem [#allocation4], %s39
    %v41 = vld [vmem:[%s40] sm:$0x1]
    %s42 = sadd.s32 %s34, 2
    %s43 = sld [smem:[#allocation3 + %s42]]
    %s44 = scalar_lea.vmem [#allocation4], %s43
    %v45 = vld [vmem:[%s44] sm:$0x1]
    %s46 = sadd.s32 %s34, 3
    %s47 = sld [smem:[#allocation3 + %s46]]
    %s48 = scalar_lea.vmem [#allocation4], %s47
    %v49 = vld [vmem:[%s48] sm:$0x1]
    %s50 = sadd.s32 %s34, 4
    %s51 = sld [smem:[#allocation3 + %s50]]
    %s52 = scalar_lea.vmem [#allocation4], %s51
    %v53 = vld [vmem:[%s52] sm:$0x1]
    %s54 = sadd.s32 %s34, 5
    %s55 = sld [smem:[#allocation3 + %s54]]
    %s56 = scalar_lea.vmem [#allocation4], %s55
    %v57 = vld [vmem:[%s56] sm:$0x1]
    %s58 = sadd.s32 %s34, 6
    %s59 = sld [smem:[#allocation3 + %s58]]
    %s60 = scalar_lea.vmem [#allocation4], %s59
    %v61 = vld [vmem:[%s60] sm:$0x1]
    %s62 = sadd.s32 %s34, 7
    %s63 = sld [smem:[#allocation3 + %s62]]
    %s64 = scalar_lea.vmem [#allocation4], %s63
    %v65 = vld [vmem:[%s64] sm:$0x1]
    %v67 = vrot.slane %v41, 7
    %v70 = vrot.slane %v45, 6
    %v73 = vrot.slane %v49, 5
    %v76 = vrot.slane %v53, 4
    %v79 = vrot.slane %v57, 3
    %v82 = vrot.slane %v61, 2
    %v85 = vrot.slane %v65, 1
    %vm87 = vcmask 1040384
    %v88 = vsel %vm87, %v37, %v67
    %vm89 = vcmask 1041408
    %v90 = vsel %vm89, %v88, %v70
    %vm91 = vcmask 1042432
    %v92 = vsel %vm91, %v90, %v73
    %vm93 = vcmask 1043456
    %v94 = vsel %vm93, %v92, %v76
    %vm95 = vcmask 1044480
    %v96 = vsel %vm95, %v94, %v79
    %vm97 = vcmask 1045504
    %v98 = vsel %vm97, %v96, %v82
    %vm99 = vcmask 1046528
    %v100 = vsel %vm99, %v98, %v85
    %101 = vst [vmem:[#allocation7] sm:$0xff] %v100
    %s102 = sadd.s32 %s34, 8
    %s103 = sld [smem:[#allocation3 + %s102]]
    %s104 = scalar_lea.vmem [#allocation4], %s103
    %v105 = vld [vmem:[%s104] sm:$0x1]
    %s106 = sadd.s32 %s34, 9
    %s107 = sld [smem:[#allocation3 + %s106]]
    %s108 = scalar_lea.vmem [#allocation4], %s107
    %v109 = vld [vmem:[%s108] sm:$0x1]
    %s110 = sadd.s32 %s34, 10
    %s111 = sld [smem:[#allocation3 + %s110]]
    %s112 = scalar_lea.vmem [#allocation4], %s111
    %v113 = vld [vmem:[%s112] sm:$0x1]
    %s114 = sadd.s32 %s34, 11
    %s115 = sld [smem:[#allocation3 + %s114]]
    %s116 = scalar_lea.vmem [#allocation4], %s115
    %v117 = vld [vmem:[%s116] sm:$0x1]
    %s118 = sadd.s32 %s34, 12
    %s119 = sld [smem:[#allocation3 + %s118]]
    %s120 = scalar_lea.vmem [#allocation4], %s119
    %v121 = vld [vmem:[%s120] sm:$0x1]
    %s122 = sadd.s32 %s34, 13
    %s123 = sld [smem:[#allocation3 + %s122]]
    %s124 = scalar_lea.vmem [#allocation4], %s123
    %v125 = vld [vmem:[%s124] sm:$0x1]
    %s126 = sadd.s32 %s34, 14
    %s127 = sld [smem:[#allocation3 + %s126]]
    %s128 = scalar_lea.vmem [#allocation4], %s127
    %v129 = vld [vmem:[%s128] sm:$0x1]
    %s130 = sadd.s32 %s34, 15
    %s131 = sld [smem:[#allocation3 + %s130]]
    %s132 = scalar_lea.vmem [#allocation4], %s131
    %v133 = vld [vmem:[%s132] sm:$0x1]
    %v135 = vrot.slane %v109, 7
    %v138 = vrot.slane %v113, 6
    %v141 = vrot.slane %v117, 5
    %v144 = vrot.slane %v121, 4
    %v147 = vrot.slane %v125, 3
    %v150 = vrot.slane %v129, 2
    %v153 = vrot.slane %v133, 1
    %v155 = vsel %vm87, %v105, %v135
    %v156 = vsel %vm89, %v155, %v138
    %v157 = vsel %vm91, %v156, %v141
    %v158 = vsel %vm93, %v157, %v144
    %v159 = vsel %vm95, %v158, %v147
    %v160 = vsel %vm97, %v159, %v150
    %v161 = vsel %vm99, %v160, %v153
    %s162 = scalar_lea.vmem [#allocation7], 8
    %163 = vst [vmem:[%s162] sm:$0xff] %v161
    // Predicated region
    $region10: #{apply.1} parent=1 // pred_check
      _
    $region11: #{apply.1} parent=1 // pred_check_branch
      %165 = sbr.rel (0) target = $region13
    $region12: #{apply.1} parent=1 // pred_region
      %167 = vsyncadd [#allocation6], 0
      %s168 = sshll.u32 [#allocation7], 4
      %s169 = int_to_ptr.vmem [resolvable:$true] %s168
      %s170 = sshll.u32 %s2, 4
      %s171 = int_to_ptr.hbm [resolvable:$true] %s170
      %176 = dma.vmem_to_hbm [thread:$0]  %s169, 256, %s171, [#allocation6], 128, 128, 8
    $region13: #{apply.1} parent=1 // pred_fallthru
      _
    // Predicated region
    $region14: #{apply.1} parent=1 // pred_check
      _
    $region15: #{apply.1} parent=1 // pred_check_branch
      %178 = sbr.rel (0) target = $region17
    $region16: #{apply.1} parent=1 // pred_region
      %180 = dma.done [#allocation6], 256
    $region17: #{apply.1} parent=1 // pred_fallthru
      _
    %181 = vsyncpa [#allocation5], 1
    %182 = vsyncpa [#allocation6], 1

</llo_original>
